<compile_context>
chip_gen: v6e
topology: v6e:2x2x1
jax: 0.10.0
libtpu: 0.0.40
codegen_flags: <defaults>
</compile_context>

<pallas_src>
import functools

import jax
import jax.numpy as jnp
from jax import lax
from jax.experimental import pallas as pl
from jax.experimental.pallas import tpu as pltpu

HIDDEN = 64


def _supports_bf16_tanh():
    """bf16 tanh only where the EUP supports bf16 (v6e / v7x); f32 tanh elsewhere (v5e, v4...)."""
    try:
        kind = jax.devices()[0].device_kind.lower()
    except Exception:
        return False
    return ("v6" in kind) or ("v7" in kind) or ("7x" in kind)


def _choose_tb(batch, block_rows):
    # tb is always a multiple of 128 so the (1, tb) output block is lane-dense/unmasked and
    # every in-kernel tile is (8,128)-friendly; keep the grid >= 2 when the batch allows so
    # the "parallel" batch axis gives v7x megacore work on both TensorCores.
    tb = min(block_rows, max(128, batch // 2))
    return max(128, (tb // 128) * 128)


def mlp_q_kernel(obs_ref, w_ref, b_ref, q_ref, *, obs_dim, r1, tanh_bf16):
    H = HIDDEN
    # Packed bf16 weights: rows [0:obs_dim]=W1, [r1:r1+64]=W2, [r1+64:r1+128]=W3
    # (r1 is 16-aligned so every bf16 sublane tile boundary is clean).
    w1 = w_ref[0:obs_dim, :]
    w2 = w_ref[r1:r1 + H, :]
    w3 = w_ref[r1 + H:r1 + 2 * H, :]

    # f32 bias/vector buffer at 8-aligned rows: 0=b1, 8=b2, 16=b3, 24=W4 row, [32,0]=b4.
    b1 = b_ref[0:1, :]
    b2 = b_ref[8:9, :]
    b3 = b_ref[16:17, :]
    w4 = b_ref[24:25, :].astype(jnp.bfloat16)      # [1, 64] (64-elem cast, negligible)
    b4 = b_ref[32:33, 0:1]                          # [1, 1]

    def dense_tanh(h, w, b):
        # bf16 MXU operands, f32 accumulate + bias add; tanh in bf16 on v6e/v7x (bf16 EUP),
        # f32 on v5e (no bf16 VPU/EUP).  astype is a no-op when h is already bf16.
        acc = jnp.dot(h.astype(jnp.bfloat16), w, preferred_element_type=jnp.float32) + b
        return jnp.tanh(acc.astype(jnp.bfloat16)) if tanh_bf16 else jnp.tanh(acc)

    x = obs_ref[...]                                # [tb, obs_dim] (f32, or bf16 if fed so)
    h = dense_tanh(x, w1, b1)
    h = dense_tanh(h, w2, b2)
    h = dense_tanh(h, w3, b3)                       # [tb, 64]

    # Final 64 -> 1 layer: contract w4 [1,64] with h [tb,64] over the 64-axis (trans_b dot).
    # This yields the lane-dense [1, tb] row the output block wants, with no degenerate
    # [tb,1] -> [1,tb] relayout; the extra MXU work is tiny next to the three 64x64 matmuls.
    q = lax.dot_general(
        w4, h.astype(jnp.bfloat16),
        dimension_numbers=(((1,), (1,)), ((), ())),
        preferred_element_type=jnp.float32) + b4    # [1, tb]
    q_ref[...] = q.astype(q_ref.dtype)


def mlp_q_forward(obs, w_packed, b_packed, r1, *, block_rows=2048, tanh_bf16=None):
    """obs: [B, obs_dim] -> q: [B, 1] f32 (same shape/semantics as the PyTorch module)."""
    B, obs_dim = obs.shape
    if tanh_bf16 is None:
        tanh_bf16 = _supports_bf16_tanh()
    tb = _choose_tb(B, block_rows)
    grid_b = pl.cdiv(B, tb)
    # ~2-3 KiB VMEM per batch row (double-buffered obs tile + f32/bf16 intermediates); only
    # bump the scoped limit when the tile is big enough to threaten v5e's 16 MiB default.
    vmem_limit = 32 * 1024 * 1024 if tb > 2048 else None
    kernel = functools.partial(mlp_q_kernel, obs_dim=obs_dim, r1=r1,
                               tanh_bf16=bool(tanh_bf16))
    q_rows = pl.pallas_call(
        kernel,
        out_shape=jax.ShapeDtypeStruct((1, grid_b * tb), jnp.float32),
        grid=(grid_b,),
        in_specs=[
            pl.BlockSpec((tb, obs_dim), lambda i: (i, 0)),   # streamed, double-buffered
            pl.BlockSpec(w_packed.shape, lambda i: (0, 0)),  # VMEM-resident (DMA'd once)
            pl.BlockSpec(b_packed.shape, lambda i: (0, 0)),  # VMEM-resident (DMA'd once)
        ],
        out_specs=pl.BlockSpec((1, tb), lambda i: (0, i)),   # lane-dense row per grid step
        compiler_params=pltpu.CompilerParams(
            dimension_semantics=("parallel",),               # megacore batch split on v7x
            vmem_limit_bytes=vmem_limit),
    )(obs, w_packed, b_packed)
    # Back to the PyTorch module's [B, 1] column; drops any padded tail columns.
    return q_rows[0, :B].reshape(B, 1)


def init_params(key, obs_dim):
    """nn.Linear-style U(-1/sqrt(fan_in), 1/sqrt(fan_in)); weights stored as [in, out]."""
    dims = [(obs_dim, HIDDEN), (HIDDEN, HIDDEN), (HIDDEN, HIDDEN), (HIDDEN, 1)]
    params = []
    for fan_in, fan_out in dims:
        key, kw, kb = jax.random.split(key, 3)
        bound = 1.0 / jnp.sqrt(jnp.float32(fan_in))
        w = jax.random.uniform(kw, (fan_in, fan_out), jnp.float32, -bound, bound)
        b = jax.random.uniform(kb, (1, fan_out), jnp.float32, -bound, bound)
        params.append((w, b))
    return params


def pack_params(params, obs_dim):
    """Pack W1..W3 into one bf16 [rows,64] buffer; b1..b3, the W4 row and b4 into one f32
    [40,64] buffer at 8-aligned rows (W4 stays f32 in the bias buffer per review item 6)."""
    (w1, b1), (w2, b2), (w3, b3), (w4, b4) = params
    H = HIDDEN
    r1 = ((obs_dim + 15) // 16) * 16          # 16-align segment starts for bf16 sublane tiles
    rows = r1 + 2 * H                         # multiple of 16
    w_packed = jnp.zeros((rows, H), jnp.bfloat16)
    w_packed = w_packed.at[0:obs_dim, :].set(w1.astype(jnp.bfloat16))
    w_packed = w_packed.at[r1:r1 + H, :].set(w2.astype(jnp.bfloat16))
    w_packed = w_packed.at[r1 + H:r1 + 2 * H, :].set(w3.astype(jnp.bfloat16))

    b_packed = jnp.zeros((40, H), jnp.float32)
    b_packed = b_packed.at[0, :].set(b1.reshape(H))
    b_packed = b_packed.at[8, :].set(b2.reshape(H))
    b_packed = b_packed.at[16, :].set(b3.reshape(H))
    b_packed = b_packed.at[24, :].set(w4[:, 0])          # W4 row, kept f32
    b_packed = b_packed.at[32, 0].set(b4[0, 0])
    return w_packed, b_packed, r1


def mlp_q_reference_f32(obs, params):
    (w1, b1), (w2, b2), (w3, b3), (w4, b4) = params
    h = jnp.tanh(obs @ w1 + b1)
    h = jnp.tanh(h @ w2 + b2)
    h = jnp.tanh(h @ w3 + b3)
    return h @ w4 + b4


def mlp_q_reference_matched(obs, params, tanh_bf16):
    """Pure-JAX reference mimicking the kernel's exact dtype path (bf16 MXU operands,
    f32 accumulate, bf16 or f32 tanh, trans_b final layer)."""
    (w1, b1), (w2, b2), (w3, b3), (w4, b4) = params
    bf = jnp.bfloat16

    def dense_tanh(h, w, b):
        acc = jnp.dot(h.astype(bf), w.astype(bf), preferred_element_type=jnp.float32) + b
        return jnp.tanh(acc.astype(bf)) if tanh_bf16 else jnp.tanh(acc)

    h = dense_tanh(obs, w1, b1)
    h = dense_tanh(h, w2, b2)
    h = dense_tanh(h, w3, b3)
    w4_row = w4[:, 0].astype(bf).reshape(1, HIDDEN)
    q_row = lax.dot_general(w4_row, h.astype(bf),
                            dimension_numbers=(((1,), (1,)), ((), ())),
                            preferred_element_type=jnp.float32)      # [1, B]
    return q_row.T + b4                                              # [B, 1]


if __name__ == "__main__":
    key = jax.random.PRNGKey(0)
    k_obs, k_params = jax.random.split(key)

    B, OBS_DIM = 256, 16
    obs = jax.random.normal(k_obs, (B, OBS_DIM), jnp.float32)
    params = init_params(k_params, OBS_DIM)
    w_packed, b_packed, r1 = pack_params(params, OBS_DIM)

    tanh_bf16 = _supports_bf16_tanh()
    q = mlp_q_forward(obs, w_packed, b_packed, r1, tanh_bf16=tanh_bf16)  # tb=128, grid=(2,)
    q = jax.block_until_ready(q)
    assert q.shape == (B, 1), q.shape

    q_ref_m = mlp_q_reference_matched(obs, params, tanh_bf16)
    q_ref_f32 = mlp_q_reference_f32(obs, params)
    err_m = float(jnp.max(jnp.abs(q - q_ref_m)))
    err_f = float(jnp.max(jnp.abs(q - q_ref_f32)))
    tol_m = 1e-2 if tanh_bf16 else 2e-3       # allow ~1 bf16-ulp tanh approximation skew
    assert jnp.allclose(q, q_ref_m, atol=tol_m, rtol=tol_m), f"matched-ref err {err_m}"
    assert jnp.allclose(q, q_ref_f32, atol=6e-2, rtol=6e-2), f"f32-ref err {err_f}"

    print("KERNEL_OK")
</pallas_src>

<mosaic_0001>
module attributes {stable_mosaic.version = 11 : i64} {
  func.func @mlp_q_kernel(%arg0: i32, %arg1: memref<128x16xf32, #tpu.memory_space<vmem>>, %arg2: memref<144x64xbf16, #tpu.memory_space<vmem>>, %arg3: memref<40x64xf32, #tpu.memory_space<vmem>>, %arg4: memref<1x128xf32, #tpu.memory_space<vmem>>) attributes {dimension_semantics = [#tpu.dimension_semantics<parallel>], iteration_bounds = array<i64: 2>, scalar_prefetch = 0 : i64, scratch_operands = 0 : i64, tpu.core_type = #tpu.core_type<tc>, window_params = [{transform_indices = @transform_0, window_bounds = array<i64: 128, 16>}, {pipeline_mode = #tpu.pipeline_mode<synchronous>, transform_indices = @transform_1, window_bounds = array<i64: 144, 64>}, {pipeline_mode = #tpu.pipeline_mode<synchronous>, transform_indices = @transform_2, window_bounds = array<i64: 40, 64>}, {transform_indices = @transform_3, window_bounds = array<i64: 1, 128>}]} {
    %c0 = arith.constant 0 : index
    %c0_0 = arith.constant 0 : index
    %0 = vector.load %arg2[%c0, %c0_0] : memref<144x64xbf16, #tpu.memory_space<vmem>>, vector<16x64xbf16>
    %c16 = arith.constant 16 : index
    %c0_1 = arith.constant 0 : index
    %1 = vector.load %arg2[%c16, %c0_1] : memref<144x64xbf16, #tpu.memory_space<vmem>>, vector<64x64xbf16>
    %c80 = arith.constant 80 : index
    %c0_2 = arith.constant 0 : index
    %2 = vector.load %arg2[%c80, %c0_2] : memref<144x64xbf16, #tpu.memory_space<vmem>>, vector<64x64xbf16>
    %c0_3 = arith.constant 0 : index
    %c0_4 = arith.constant 0 : index
    %3 = vector.load %arg3[%c0_3, %c0_4] : memref<40x64xf32, #tpu.memory_space<vmem>>, vector<1x64xf32>
    %c8 = arith.constant 8 : index
    %c0_5 = arith.constant 0 : index
    %4 = vector.load %arg3[%c8, %c0_5] : memref<40x64xf32, #tpu.memory_space<vmem>>, vector<1x64xf32>
    %c16_6 = arith.constant 16 : index
    %c0_7 = arith.constant 0 : index
    %5 = vector.load %arg3[%c16_6, %c0_7] : memref<40x64xf32, #tpu.memory_space<vmem>>, vector<1x64xf32>
    %c24 = arith.constant 24 : index
    %c0_8 = arith.constant 0 : index
    %6 = vector.load %arg3[%c24, %c0_8] : memref<40x64xf32, #tpu.memory_space<vmem>>, vector<1x64xf32>
    %7 = arith.truncf %6 : vector<1x64xf32> to vector<1x64xbf16>
    %c32 = arith.constant 32 : index
    %c0_9 = arith.constant 0 : index
    %8 = vector.load %arg3[%c32, %c0_9] : memref<40x64xf32, #tpu.memory_space<vmem>>, vector<1x1xf32>
    %c0_10 = arith.constant 0 : index
    %c0_11 = arith.constant 0 : index
    %9 = vector.load %arg1[%c0_10, %c0_11] : memref<128x16xf32, #tpu.memory_space<vmem>>, vector<128x16xf32>
    %10 = arith.truncf %9 : vector<128x16xf32> to vector<128x16xbf16>
    %cst = arith.constant dense<0.000000e+00> : vector<128x64xf32>
    %11 = tpu.matmul %10, %0, %cst {dimension_numbers = #tpu.dot_dimension_numbers<[1], [0], [0], [1], [0, 0, 1, 1], [], []>} : vector<128x16xbf16>, vector<16x64xbf16>, vector<128x64xf32> -> vector<128x64xf32>
    %12 = vector.broadcast %3 : vector<1x64xf32> to vector<128x64xf32>
    %13 = arith.addf %11, %12 : vector<128x64xf32>
    %14 = math.tanh %13 : vector<128x64xf32>
    %15 = arith.truncf %14 : vector<128x64xf32> to vector<128x64xbf16>
    %cst_12 = arith.constant dense<0.000000e+00> : vector<128x64xf32>
    %16 = tpu.matmul %15, %1, %cst_12 {dimension_numbers = #tpu.dot_dimension_numbers<[1], [0], [0], [1], [0, 0, 1, 1], [], []>} : vector<128x64xbf16>, vector<64x64xbf16>, vector<128x64xf32> -> vector<128x64xf32>
    %17 = vector.broadcast %4 : vector<1x64xf32> to vector<128x64xf32>
    %18 = arith.addf %16, %17 : vector<128x64xf32>
    %19 = math.tanh %18 : vector<128x64xf32>
    %20 = arith.truncf %19 : vector<128x64xf32> to vector<128x64xbf16>
    %cst_13 = arith.constant dense<0.000000e+00> : vector<128x64xf32>
    %21 = tpu.matmul %20, %2, %cst_13 {dimension_numbers = #tpu.dot_dimension_numbers<[1], [0], [0], [1], [0, 0, 1, 1], [], []>} : vector<128x64xbf16>, vector<64x64xbf16>, vector<128x64xf32> -> vector<128x64xf32>
    %22 = vector.broadcast %5 : vector<1x64xf32> to vector<128x64xf32>
    %23 = arith.addf %21, %22 : vector<128x64xf32>
    %24 = math.tanh %23 : vector<128x64xf32>
    %25 = arith.truncf %24 : vector<128x64xf32> to vector<128x64xbf16>
    %cst_14 = arith.constant dense<0.000000e+00> : vector<1x128xf32>
    %26 = tpu.matmul %7, %25, %cst_14 {dimension_numbers = #tpu.dot_dimension_numbers<[1], [1], [0], [0], [0, 0, 1, 0], [], []>} : vector<1x64xbf16>, vector<128x64xbf16>, vector<1x128xf32> -> vector<1x128xf32>
    %27 = vector.broadcast %8 : vector<1x1xf32> to vector<1x128xf32>
    %28 = arith.addf %26, %27 : vector<1x128xf32>
    %c0_15 = arith.constant 0 : index
    %c0_16 = arith.constant 0 : index
    %29 = vector.load %arg4[%c0_15, %c0_16] : memref<1x128xf32, #tpu.memory_space<vmem>>, vector<1x128xf32>
    tpu.vector_store %arg4[%c0_15, %c0_16], %28 {strides = array<i32>} : memref<1x128xf32, #tpu.memory_space<vmem>>, vector<1x128xf32>,
    return
  }
  func.func @transform_0(%arg0: i32) -> (i32, i32) {
    %c0_i32 = arith.constant 0 : i32
    %c0_i32_0 = arith.constant 0 : i32
    return %arg0, %c0_i32 : i32, i32
  }
  func.func @transform_1(%arg0: i32) -> (i32, i32) {
    %c0_i32 = arith.constant 0 : i32
    %c0_i32_0 = arith.constant 0 : i32
    %c0_i32_1 = arith.constant 0 : i32
    return %c0_i32, %c0_i32_0 : i32, i32
  }
  func.func @transform_2(%arg0: i32) -> (i32, i32) {
    %c0_i32 = arith.constant 0 : i32
    %c0_i32_0 = arith.constant 0 : i32
    %c0_i32_1 = arith.constant 0 : i32
    return %c0_i32, %c0_i32_0 : i32, i32
  }
  func.func @transform_3(%arg0: i32) -> (i32, i32) {
    %c0_i32 = arith.constant 0 : i32
    %c0_i32_0 = arith.constant 0 : i32
    return %c0_i32, %arg0 : i32, i32
  }
}

</mosaic_0001>

<llo_original>
// kernel: tpu_custom_call.1
$region0: #{tpu_custom_call.1}
  #allocation0 [shape = 'u32[]', space=smem, size = 0x4, offset = 0x4, fixed_abs, tag = 'smem constant byte address 0x4 - core index']
  #allocation1 [shape = 'u32[144,128]{1,0:T(1,128)}', space=vmem, size = 0x12000, scoped, tag = 'internal scratch']
  %s0 = inlined_call_operand.vmem [shape: f32[256,16], index: 0, kind: input, shape index: {}]
  %s1 = inlined_call_operand.vmem [shape: bf16[144,64], index: 1, kind: input, shape index: {}]
  %s2 = inlined_call_operand.vmem [shape: f32[40,64], index: 2, kind: input, shape index: {}]
  %s3 = inlined_call_operand.hbm [shape: f32[1,256], index: 3, kind: output, shape index: {}]
  %s4 = sld [smem:[#allocation0]]
  $region45: #{tpu_custom_call.1} parent=0
    _
  %s6 = ssub.s32 1, %s4
  %s7 = scalar_select 0, %s6, %s4
  $region1: #{tpu_custom_call.1} parent=0
    #allocation2 [shape = 'u8[1024]{0}', space=vmem, size = 0x400, scoped, tag = 'output window, operand 0']
    #allocation3 [shape = 's32[2]{0}', space=sflag, size = 0x8, scoped, tag = 'scoped memory for tpu_custom_call.1']
    %8 = vsyncpa [#allocation3], 0
    %s9 = scalar_lea.sflag [#allocation3], 1
    %10 = vsyncpa %s9, 0
    loop: start=0, step=1, limit=4
    $region2: #{tpu_custom_call.1} parent=1 // loop_pre_header
      _
    $region3: #{tpu_custom_call.1} parent=1 // loop_header
      %s12 = sphi 0, %s16
      %p13 = scmp.ge.s32.totalorder %s12, 4
      %s22 = sphi 0, %s24
      %s25 = sphi 0, %s22
      %s26 = sphi 0, %s25
      %s42 = sphi 0, %s26
      %s46 = sphi 0, %s46
      %s48 = sphi 0, %s46
      %s49 = sphi 0, %s48
      %s63 = sphi 0, %s49
      %s67 = sphi 0, %s67
      %s69 = sphi 0, %s67
      %s70 = sphi 0, %s69
      %s84 = sphi 0, %s70
      %s90 = sphi 0, %s92
      %s93 = sphi 0, %s90
      %s94 = sphi 0, %s93
      %s110 = sphi 0, %s94
    $region4: #{tpu_custom_call.1} parent=1 // loop_header_branch
      %15 = sbr.rel (%p13) target = $region8
    $region5: #{tpu_custom_call.1} parent=1 // loop_body
      %s17 = ssub.s32 %s12, 1
      %s18 = ssub.s32 %s12, 2
      %s19 = sadd.s32 %s12, 1
      %s20 = ssub.s32 %s12, %s19
      %p21 = scmp.eq.s32.totalorder %s20, 0
      %s23 = sadd.s32 %s22, 1
      %s24 = scalar_select %p21, %s22, %s23
      %p27 = pneg %p21
      %p28 = scmp.eq.s32.totalorder %s12, 1
      %p29 = por %p27, %p28
      %p30 = scmp.ne.s32.totalorder %s22, %s25
      %p31 = scmp.eq.s32.totalorder %s12, 0
      %p32 = por %p30, %p31
      %p33 = scmp.ne.s32.totalorder %s22, %s25
      %p34 = scmp.eq.s32.totalorder %s17, 1
      %p35 = por %p33, %p34
      %p36 = scmp.ne.s32.totalorder %s25, %s26
      %p37 = scmp.eq.s32.totalorder %s17, 0
      %p38 = por %p36, %p37
      %p39 = scmp.ne.s32.totalorder %s25, %s26
      %p40 = scmp.eq.s32.totalorder %s18, 1
      %p41 = por %p39, %p40
      %p43 = scmp.ne.s32.totalorder %s26, %s42
      %p44 = scmp.eq.s32.totalorder %s18, 0
      %p45 = por %p43, %p44
      %s47 = sadd.s32 %s46, 1
      %p50 = scmp.eq.s32.totalorder %s12, 1
      %p51 = scmp.ne.s32.totalorder %s46, %s48
      %p52 = scmp.eq.s32.totalorder %s12, 0
      %p53 = por %p51, %p52
      %p54 = scmp.ne.s32.totalorder %s46, %s48
      %p55 = scmp.eq.s32.totalorder %s17, 1
      %p56 = por %p54, %p55
      %p57 = scmp.ne.s32.totalorder %s48, %s49
      %p58 = scmp.eq.s32.totalorder %s17, 0
      %p59 = por %p57, %p58
      %p60 = scmp.ne.s32.totalorder %s48, %s49
      %p61 = scmp.eq.s32.totalorder %s18, 1
      %p62 = por %p60, %p61
      %p64 = scmp.ne.s32.totalorder %s49, %s63
      %p65 = scmp.eq.s32.totalorder %s18, 0
      %p66 = por %p64, %p65
      %s68 = sadd.s32 %s67, 1
      %p71 = scmp.eq.s32.totalorder %s12, 1
      %p72 = scmp.ne.s32.totalorder %s67, %s69
      %p73 = scmp.eq.s32.totalorder %s12, 0
      %p74 = por %p72, %p73
      %p75 = scmp.ne.s32.totalorder %s67, %s69
      %p76 = scmp.eq.s32.totalorder %s17, 1
      %p77 = por %p75, %p76
      %p78 = scmp.ne.s32.totalorder %s69, %s70
      %p79 = scmp.eq.s32.totalorder %s17, 0
      %p80 = por %p78, %p79
      %p81 = scmp.ne.s32.totalorder %s69, %s70
      %p82 = scmp.eq.s32.totalorder %s18, 1
      %p83 = por %p81, %p82
      %p85 = scmp.ne.s32.totalorder %s70, %s84
      %p86 = scmp.eq.s32.totalorder %s18, 0
      %p87 = por %p85, %p86
      %s88 = ssub.s32 %s12, %s19
      %p89 = scmp.eq.s32.totalorder %s88, 0
      %s91 = sadd.s32 %s90, 1
      %s92 = scalar_select %p89, %s90, %s91
      %p95 = pneg %p89
      %p96 = scmp.eq.s32.totalorder %s12, 1
      %p97 = por %p95, %p96
      %p98 = scmp.ne.s32.totalorder %s90, %s93
      %p99 = scmp.eq.s32.totalorder %s12, 0
      %p100 = por %p98, %p99
      %p101 = scmp.ne.s32.totalorder %s90, %s93
      %p102 = scmp.eq.s32.totalorder %s17, 1
      %p103 = por %p101, %p102
      %p104 = scmp.ne.s32.totalorder %s93, %s94
      %p105 = scmp.eq.s32.totalorder %s17, 0
      %p106 = por %p104, %p105
      %p107 = scmp.ne.s32.totalorder %s93, %s94
      %p108 = scmp.eq.s32.totalorder %s18, 1
      %p109 = por %p107, %p108
      %p111 = scmp.ne.s32.totalorder %s94, %s110
      %p112 = scmp.eq.s32.totalorder %s18, 0
      %p113 = por %p111, %p112
      %p114 = scmp.le.s32.totalorder 1, %s12
      %p115 = scmp.lt.s32.totalorder %s12, 3
      %p116 = pnand %p114, %p115
      %p117 = pneg %p116
      // Predicated region
      $region9: #{tpu_custom_call.1} parent=5 // pred_check
        _
      $region10: #{tpu_custom_call.1} parent=5 // pred_check_branch
        %119 = sbr.rel (%p116) target = $region12
      $region11: #{tpu_custom_call.1} parent=5 // pred_region
        %s120 = ssub.s32 %s12, 1
        // Predicated region
        $region13: #{tpu_custom_call.1} parent=11 // pred_check
          %p121 = pneg %p59
        $region14: #{tpu_custom_call.1} parent=11 // pred_check_branch
          %123 = sbr.rel (%p121) target = $region16
        $region15: #{tpu_custom_call.1} parent=11 // pred_region
          _
        $region16: #{tpu_custom_call.1} parent=11 // pred_fallthru
          _
        // Predicated region
        $region17: #{tpu_custom_call.1} parent=11 // pred_check
          %p124 = pneg %p80
        $region18: #{tpu_custom_call.1} parent=11 // pred_check_branch
          %126 = sbr.rel (%p124) target = $region20
        $region19: #{tpu_custom_call.1} parent=11 // pred_region
          _
        $region20: #{tpu_custom_call.1} parent=11 // pred_fallthru
          _
      $region12: #{tpu_custom_call.1} parent=5 // pred_fallthru
        _
      %p127 = scmp.lt.s32.totalorder %s12, 2
      // Predicated region
      $region21: #{tpu_custom_call.1} parent=5 // pred_check
        %p128 = pneg %p127
      $region22: #{tpu_custom_call.1} parent=5 // pred_check_branch
        %130 = sbr.rel (%p128) target = $region24
      $region23: #{tpu_custom_call.1} parent=5 // pred_region
        // Predicated region
        $region25: #{tpu_custom_call.1} parent=23 // pred_check
          %p131 = pneg %p32
        $region26: #{tpu_custom_call.1} parent=23 // pred_check_branch
          %133 = sbr.rel (%p131) target = $region28
        $region27: #{tpu_custom_call.1} parent=23 // pred_region
          %s134 = smul.u32 16, %s12
          %p135 = scmp.lt.s32.totalorder %s134, 31
          %s136 = scalar_select %p135, %s134, 31
          %s137 = smul.addr %s136, 8
          %s138 = scalar_lea.vmem %s0, %s137
          %s139 = smul.u32 16, %s12
        $region28: #{tpu_custom_call.1} parent=23 // pred_fallthru
          _
      $region24: #{tpu_custom_call.1} parent=5 // pred_fallthru
        _
      %p140 = scmp.le.s32.totalorder 1, %s12
      %p141 = scmp.lt.s32.totalorder %s12, 3
      %p142 = pnand %p140, %p141
      %p143 = pneg %p142
      // Predicated region
      $region29: #{tpu_custom_call.1} parent=5 // pred_check
        _
      $region30: #{tpu_custom_call.1} parent=5 // pred_check_branch
        %145 = sbr.rel (%p142) target = $region32
      $region31: #{tpu_custom_call.1} parent=5 // pred_region
        %s146 = ssub.s32 %s12, 1
        %s147 = smul.u32 16, %s17
        %p148 = scmp.lt.s32.totalorder %s147, 31
        %s149 = scalar_select %p148, %s147, 31
        %s150 = smul.addr %s149, 8
        %s151 = scalar_lea.vmem %s0, %s150
        %p152 = pneg %p38
        %p153 = pneg %p35
        %p154 = pneg %p59
        %p155 = pneg %p56
        %p156 = pneg %p80
        %p157 = pneg %p77
        %p158 = pneg %p106
        %p159 = pneg %p103
        %s160 = sand.u32 %s93, 1
        %s161 = scalar_lea.sflag [#allocation3], %s160
        %s162 = sand.u32 %s93, 1
        %s163 = scalar_lea.vmem [#allocation2], %s162
        %s164 = smul.u32 16, %s17
        %p165 = scmp.lt.s32.totalorder %s164, 31
        %s166 = scalar_select %p165, %s164, 31
        %s167 = smul.addr %s166, 8
        %s168 = scalar_lea.vmem %s0, %s167
        %s169 = smul.u32 16, %s17
        %v171 = vld [vmem:[%s1] sm:$0xf]
        %v172 = vld [vmem:[%s1 + $0x4] sm:$0xf]
        %v173 = vld [vmem:[%s1 + $0x8] sm:$0xf]
        %v174 = vld [vmem:[%s1 + $0xc] sm:$0xf]
        %v175 = vld [vmem:[%s1 + $0x10] sm:$0xf]
        %v176 = vld [vmem:[%s1 + $0x14] sm:$0xf]
        %v177 = vld [vmem:[%s1 + $0x18] sm:$0xf]
        %v178 = vld [vmem:[%s1 + $0x1c] sm:$0xf]
        %v179 = vld [vmem:[%s1 + $0x20] sm:$0xf]
        %v180 = vld [vmem:[%s1 + $0x24] sm:$0xf]
        %v181 = vld [vmem:[%s1 + $0x28] sm:$0xf]
        %v182 = vld [vmem:[%s1 + $0x2c] sm:$0xf]
        %v183 = vld [vmem:[%s1 + $0x30] sm:$0xf]
        %v184 = vld [vmem:[%s1 + $0x34] sm:$0xf]
        %v185 = vld [vmem:[%s1 + $0x38] sm:$0xf]
        %v186 = vld [vmem:[%s1 + $0x3c] sm:$0xf]
        %v187 = vld [vmem:[%s1 + $0x40] sm:$0xf]
        %v188 = vld [vmem:[%s1 + $0x44] sm:$0xf]
        %v189 = vld [vmem:[%s2] sm:$0x1]
        %v190 = vld [vmem:[%s2 + $0x8] sm:$0x1]
        %v191 = vld [vmem:[%s2 + $0x10] sm:$0x1]
        %v192 = vld [vmem:[%s2 + $0x18] sm:$0x1]
        %v193 = vpack.c.bf16 %v192, %v192
        %v194 = vld [vmem:[%s2 + $0x20] sm:$0x1]
        %v195 = vld [vmem:[%s168] sm:$0xff]
        %v196 = vld [vmem:[%s168 + $0x8] sm:$0xff]
        %v197 = vld [vmem:[%s168 + $0x10] sm:$0xff]
        %v198 = vld [vmem:[%s168 + $0x18] sm:$0xff]
        %v199 = vld [vmem:[%s168 + $0x20] sm:$0xff]
        %v200 = vld [vmem:[%s168 + $0x28] sm:$0xff]
        %v201 = vld [vmem:[%s168 + $0x30] sm:$0xff]
        %v202 = vld [vmem:[%s168 + $0x38] sm:$0xff]
        %v203 = vld [vmem:[%s168 + $0x40] sm:$0xff]
        %v204 = vld [vmem:[%s168 + $0x48] sm:$0xff]
        %v205 = vld [vmem:[%s168 + $0x50] sm:$0xff]
        %v206 = vld [vmem:[%s168 + $0x58] sm:$0xff]
        %v207 = vld [vmem:[%s168 + $0x60] sm:$0xff]
        %v208 = vld [vmem:[%s168 + $0x68] sm:$0xff]
        %v209 = vld [vmem:[%s168 + $0x70] sm:$0xff]
        %v210 = vld [vmem:[%s168 + $0x78] sm:$0xff]
        %v211 = vpack.c.bf16 %v196, %v195
        %v212 = vpack.c.bf16 %v198, %v197
        %v213 = vpack.c.bf16 %v200, %v199
        %v214 = vpack.c.bf16 %v202, %v201
        %v215 = vpack.c.bf16 %v204, %v203
        %v216 = vpack.c.bf16 %v206, %v205
        %v217 = vpack.c.bf16 %v208, %v207
        %v218 = vpack.c.bf16 %v210, %v209
        %v219 = vlaneseq
        %v220 = vshrl.u32 %v219, 7
        %v221 = vsub.s32 0, %v220
        %v222 = vrot.slane %v189, %v221
        %v225 = vunpack.c.l.b16 %v171
        %v226 = vunpack.c.l.b16 %v172
        %v227 = vpack.c.b16 %v226, %v225
        %vm229 = vcmask 130048
        %v231 = vsel %vm229, %v211, 0
        %v234 = vsel %vm229, %v212, 0
        %v237 = vsel %vm229, %v213, 0
        %v240 = vsel %vm229, %v214, 0
        %v243 = vsel %vm229, %v215, 0
        %v246 = vsel %vm229, %v216, 0
        %v249 = vsel %vm229, %v217, 0
        %v252 = vsel %vm229, %v218, 0
        %254 = vmatprep.subr.bf16.mxu0 0
        %255 = vmatpush1.bf16.msra.mxu0 0
        %256 = vmatprep.subr.bf16.mxu0 0
        %257 = vmatpush1.bf16.msra.mxu0 0
        %258 = vmatprep.subr.bf16.mxu0 0
        %259 = vmatpush1.bf16.msra.mxu0 0
        %260 = vmatprep.subr.bf16.mxu0 0
        %261 = vmatpush1.bf16.msra.mxu0 0
        %262 = vmatprep.subr.bf16.mxu0 0
        %263 = vmatpush1.bf16.msra.mxu0 0
        %264 = vmatprep.subr.bf16.mxu0 0
        %265 = vmatpush1.bf16.msra.mxu0 0
        %266 = vmatprep.subr.bf16.mxu0 0
        %267 = vmatpush1.bf16.msra.mxu0 0
        %268 = vmatprep.subr.bf16.mxu0 0
        %269 = vmatpush1.bf16.msra.mxu0 %v227
        %270 = vmatprep.subr.bf16.mxu0 0
        %271 = vmatpush2.bf16.msra.mxu0 0
        %272 = vmatprep.subr.bf16.mxu0 0
        %273 = vmatpush2.bf16.msra.mxu0 0
        %274 = vmatprep.subr.bf16.mxu0 0
        %275 = vmatpush2.bf16.msra.mxu0 0
        %276 = vmatprep.subr.bf16.mxu0 0
        %277 = vmatpush2.bf16.msra.mxu0 0
        %278 = vmatprep.subr.bf16.mxu0 0
        %279 = vmatpush2.bf16.msra.mxu0 0
        %280 = vmatprep.subr.bf16.mxu0 0
        %281 = vmatpush2.bf16.msra.mxu0 0
        %282 = vmatprep.subr.bf16.mxu0 0
        %283 = vmatpush2.bf16.msra.mxu0 0
        %284 = vmatprep.subr.bf16.mxu0 0
        %285 = vmatpush2.bf16.msra.mxu0 0
        %286 = vmatprep.mubr.bf16.mxu0 0
        %287 = vmatmul.mubr.bf16.gmra.mxu0 %v231
        %v288 = vpop.f32.mrf.mxu0
        %v289 = vadd.f32 %v222, %v288
        %v290 = vpop.f32.mrf.mxu0
        %v291 = vpop.f32.mrf.mxu0
        %v292 = vadd.f32 %v222, %v291
        %v293 = vpop.f32.mrf.mxu0
        %294 = vmatprep.mubr.bf16.mxu0 0
        %295 = vmatmul.mubr.bf16.gmra.mxu0 %v234
        %v296 = vpop.f32.mrf.mxu0
        %v297 = vadd.f32 %v222, %v296
        %v298 = vpop.f32.mrf.mxu0
        %v299 = vpop.f32.mrf.mxu0
        %v300 = vadd.f32 %v222, %v299
        %v301 = vpop.f32.mrf.mxu0
        %302 = vmatprep.mubr.bf16.mxu0 0
        %303 = vmatmul.mubr.bf16.gmra.mxu0 %v237
        %v304 = vpop.f32.mrf.mxu0
        %v305 = vadd.f32 %v222, %v304
        %v306 = vpop.f32.mrf.mxu0
        %v307 = vpop.f32.mrf.mxu0
        %v308 = vadd.f32 %v222, %v307
        %v309 = vpop.f32.mrf.mxu0
        %310 = vmatprep.mubr.bf16.mxu0 0
        %311 = vmatmul.mubr.bf16.gmra.mxu0 %v240
        %v312 = vpop.f32.mrf.mxu0
        %v313 = vadd.f32 %v222, %v312
        %v314 = vpop.f32.mrf.mxu0
        %v315 = vpop.f32.mrf.mxu0
        %v316 = vadd.f32 %v222, %v315
        %v317 = vpop.f32.mrf.mxu0
        %318 = vmatprep.mubr.bf16.mxu0 0
        %319 = vmatmul.mubr.bf16.gmra.mxu0 %v243
        %v320 = vpop.f32.mrf.mxu0
        %v321 = vadd.f32 %v222, %v320
        %v322 = vpop.f32.mrf.mxu0
        %v323 = vpop.f32.mrf.mxu0
        %v324 = vadd.f32 %v222, %v323
        %v325 = vpop.f32.mrf.mxu0
        %326 = vmatprep.mubr.bf16.mxu0 0
        %327 = vmatmul.mubr.bf16.gmra.mxu0 %v246
        %v328 = vpop.f32.mrf.mxu0
        %v329 = vadd.f32 %v222, %v328
        %v330 = vpop.f32.mrf.mxu0
        %v331 = vpop.f32.mrf.mxu0
        %v332 = vadd.f32 %v222, %v331
        %v333 = vpop.f32.mrf.mxu0
        %334 = vmatprep.mubr.bf16.mxu0 0
        %335 = vmatmul.mubr.bf16.gmra.mxu0 %v249
        %v336 = vpop.f32.mrf.mxu0
        %v337 = vadd.f32 %v222, %v336
        %v338 = vpop.f32.mrf.mxu0
        %v339 = vpop.f32.mrf.mxu0
        %v340 = vadd.f32 %v222, %v339
        %v341 = vpop.f32.mrf.mxu0
        %342 = vmatprep.mubr.bf16.mxu0 0
        %343 = vmatmul.mubr.bf16.gmra.mxu0 %v252
        %v344 = vpop.f32.mrf.mxu0
        %v345 = vadd.f32 %v222, %v344
        %v346 = vpop.f32.mrf.mxu0
        %v347 = vpop.f32.mrf.mxu0
        %v348 = vadd.f32 %v222, %v347
        %v349 = vpop.f32.mrf.mxu0
        %350 = vdwg.mxu0
        %v351 = vtanh.pop %v289
        %v352 = vtanh.pop %v292
        %v353 = vtanh.pop %v297
        %v354 = vtanh.pop %v300
        %v355 = vtanh.pop %v305
        %v356 = vtanh.pop %v308
        %v357 = vtanh.pop %v313
        %v358 = vtanh.pop %v316
        %v359 = vtanh.pop %v321
        %v360 = vtanh.pop %v324
        %v361 = vtanh.pop %v329
        %v362 = vtanh.pop %v332
        %v363 = vtanh.pop %v337
        %v364 = vtanh.pop %v340
        %v365 = vtanh.pop %v345
        %v366 = vtanh.pop %v348
        %v367 = vpack.c.bf16 %v352, %v351
        %v368 = vpack.c.bf16 %v354, %v353
        %v369 = vpack.c.bf16 %v356, %v355
        %v370 = vpack.c.bf16 %v358, %v357
        %v371 = vpack.c.bf16 %v360, %v359
        %v372 = vpack.c.bf16 %v362, %v361
        %v373 = vpack.c.bf16 %v364, %v363
        %v374 = vpack.c.bf16 %v366, %v365
        %v375 = vlaneseq
        %v376 = vshrl.u32 %v375, 7
        %v377 = vsub.s32 0, %v376
        %v378 = vrot.slane %v190, %v377
        %v387 = vunpack.c.l.b16 %v173
        %v388 = vunpack.c.l.b16 %v174
        %v389 = vunpack.c.l.b16 %v175
        %v390 = vunpack.c.l.b16 %v176
        %v391 = vunpack.c.l.b16 %v177
        %v392 = vunpack.c.l.b16 %v178
        %v393 = vunpack.c.l.b16 %v179
        %v394 = vunpack.c.l.b16 %v180
        %v395 = vpack.c.b16 %v388, %v387
        %v396 = vpack.c.b16 %v390, %v389
        %v397 = vpack.c.b16 %v392, %v391
        %v398 = vpack.c.b16 %v394, %v393
        %vm403 = vcmask 523264
        %v405 = vsel %vm403, %v367, 0
        %v408 = vsel %vm403, %v368, 0
        %v411 = vsel %vm403, %v369, 0
        %v414 = vsel %vm403, %v370, 0
        %v417 = vsel %vm403, %v371, 0
        %v420 = vsel %vm403, %v372, 0
        %v423 = vsel %vm403, %v373, 0
        %v426 = vsel %vm403, %v374, 0
        %428 = vmatprep.subr.bf16.mxu0 0
        %429 = vmatpush1.bf16.msra.mxu0 0
        %430 = vmatprep.subr.bf16.mxu0 0
        %431 = vmatpush1.bf16.msra.mxu0 0
        %432 = vmatprep.subr.bf16.mxu0 0
        %433 = vmatpush1.bf16.msra.mxu0 0
        %434 = vmatprep.subr.bf16.mxu0 0
        %435 = vmatpush1.bf16.msra.mxu0 0
        %436 = vmatprep.subr.bf16.mxu0 0
        %437 = vmatpush1.bf16.msra.mxu0 %v398
        %438 = vmatprep.subr.bf16.mxu0 0
        %439 = vmatpush1.bf16.msra.mxu0 %v397
        %440 = vmatprep.subr.bf16.mxu0 0
        %441 = vmatpush1.bf16.msra.mxu0 %v396
        %442 = vmatprep.subr.bf16.mxu0 0
        %443 = vmatpush1.bf16.msra.mxu0 %v395
        %444 = vmatprep.subr.bf16.mxu0 0
        %445 = vmatpush2.bf16.msra.mxu0 0
        %446 = vmatprep.subr.bf16.mxu0 0
        %447 = vmatpush2.bf16.msra.mxu0 0
        %448 = vmatprep.subr.bf16.mxu0 0
        %449 = vmatpush2.bf16.msra.mxu0 0
        %450 = vmatprep.subr.bf16.mxu0 0
        %451 = vmatpush2.bf16.msra.mxu0 0
        %452 = vmatprep.subr.bf16.mxu0 0
        %453 = vmatpush2.bf16.msra.mxu0 0
        %454 = vmatprep.subr.bf16.mxu0 0
        %455 = vmatpush2.bf16.msra.mxu0 0
        %456 = vmatprep.subr.bf16.mxu0 0
        %457 = vmatpush2.bf16.msra.mxu0 0
        %458 = vmatprep.subr.bf16.mxu0 0
        %459 = vmatpush2.bf16.msra.mxu0 0
        %460 = vmatprep.mubr.bf16.mxu0 0
        %461 = vmatmul.mubr.bf16.gmra.mxu0 %v405
        %v462 = vpop.f32.mrf.mxu0
        %v463 = vadd.f32 %v378, %v462
        %v464 = vpop.f32.mrf.mxu0
        %v465 = vpop.f32.mrf.mxu0
        %v466 = vadd.f32 %v378, %v465
        %v467 = vpop.f32.mrf.mxu0
        %468 = vmatprep.mubr.bf16.mxu0 0
        %469 = vmatmul.mubr.bf16.gmra.mxu0 %v408
        %v470 = vpop.f32.mrf.mxu0
        %v471 = vadd.f32 %v378, %v470
        %v472 = vpop.f32.mrf.mxu0
        %v473 = vpop.f32.mrf.mxu0
        %v474 = vadd.f32 %v378, %v473
        %v475 = vpop.f32.mrf.mxu0
        %476 = vmatprep.mubr.bf16.mxu0 0
        %477 = vmatmul.mubr.bf16.gmra.mxu0 %v411
        %v478 = vpop.f32.mrf.mxu0
        %v479 = vadd.f32 %v378, %v478
        %v480 = vpop.f32.mrf.mxu0
        %v481 = vpop.f32.mrf.mxu0
        %v482 = vadd.f32 %v378, %v481
        %v483 = vpop.f32.mrf.mxu0
        %484 = vmatprep.mubr.bf16.mxu0 0
        %485 = vmatmul.mubr.bf16.gmra.mxu0 %v414
        %v486 = vpop.f32.mrf.mxu0
        %v487 = vadd.f32 %v378, %v486
        %v488 = vpop.f32.mrf.mxu0
        %v489 = vpop.f32.mrf.mxu0
        %v490 = vadd.f32 %v378, %v489
        %v491 = vpop.f32.mrf.mxu0
        %492 = vmatprep.mubr.bf16.mxu0 0
        %493 = vmatmul.mubr.bf16.gmra.mxu0 %v417
        %v494 = vpop.f32.mrf.mxu0
        %v495 = vadd.f32 %v378, %v494
        %v496 = vpop.f32.mrf.mxu0
        %v497 = vpop.f32.mrf.mxu0
        %v498 = vadd.f32 %v378, %v497
        %v499 = vpop.f32.mrf.mxu0
        %500 = vmatprep.mubr.bf16.mxu0 0
        %501 = vmatmul.mubr.bf16.gmra.mxu0 %v420
        %v502 = vpop.f32.mrf.mxu0
        %v503 = vadd.f32 %v378, %v502
        %v504 = vpop.f32.mrf.mxu0
        %v505 = vpop.f32.mrf.mxu0
        %v506 = vadd.f32 %v378, %v505
        %v507 = vpop.f32.mrf.mxu0
        %508 = vmatprep.mubr.bf16.mxu0 0
        %509 = vmatmul.mubr.bf16.gmra.mxu0 %v423
        %v510 = vpop.f32.mrf.mxu0
        %v511 = vadd.f32 %v378, %v510
        %v512 = vpop.f32.mrf.mxu0
        %v513 = vpop.f32.mrf.mxu0
        %v514 = vadd.f32 %v378, %v513
        %v515 = vpop.f32.mrf.mxu0
        %516 = vmatprep.mubr.bf16.mxu0 0
        %517 = vmatmul.mubr.bf16.gmra.mxu0 %v426
        %v518 = vpop.f32.mrf.mxu0
        %v519 = vadd.f32 %v378, %v518
        %v520 = vpop.f32.mrf.mxu0
        %v521 = vpop.f32.mrf.mxu0
        %v522 = vadd.f32 %v378, %v521
        %v523 = vpop.f32.mrf.mxu0
        %524 = vdwg.mxu0
        %v525 = vtanh.pop %v463
        %v526 = vtanh.pop %v466
        %v527 = vtanh.pop %v471
        %v528 = vtanh.pop %v474
        %v529 = vtanh.pop %v479
        %v530 = vtanh.pop %v482
        %v531 = vtanh.pop %v487
        %v532 = vtanh.pop %v490
        %v533 = vtanh.pop %v495
        %v534 = vtanh.pop %v498
        %v535 = vtanh.pop %v503
        %v536 = vtanh.pop %v506
        %v537 = vtanh.pop %v511
        %v538 = vtanh.pop %v514
        %v539 = vtanh.pop %v519
        %v540 = vtanh.pop %v522
        %v541 = vpack.c.bf16 %v526, %v525
        %v542 = vpack.c.bf16 %v528, %v527
        %v543 = vpack.c.bf16 %v530, %v529
        %v544 = vpack.c.bf16 %v532, %v531
        %v545 = vpack.c.bf16 %v534, %v533
        %v546 = vpack.c.bf16 %v536, %v535
        %v547 = vpack.c.bf16 %v538, %v537
        %v548 = vpack.c.bf16 %v540, %v539
        %v549 = vlaneseq
        %v550 = vshrl.u32 %v549, 7
        %v551 = vsub.s32 0, %v550
        %v552 = vrot.slane %v191, %v551
        %v561 = vunpack.c.l.b16 %v181
        %v562 = vunpack.c.l.b16 %v182
        %v563 = vunpack.c.l.b16 %v183
        %v564 = vunpack.c.l.b16 %v184
        %v565 = vunpack.c.l.b16 %v185
        %v566 = vunpack.c.l.b16 %v186
        %v567 = vunpack.c.l.b16 %v187
        %v568 = vunpack.c.l.b16 %v188
        %v569 = vpack.c.b16 %v562, %v561
        %v570 = vpack.c.b16 %v564, %v563
        %v571 = vpack.c.b16 %v566, %v565
        %v572 = vpack.c.b16 %v568, %v567
        %v578 = vsel %vm403, %v541, 0
        %v581 = vsel %vm403, %v542, 0
        %v584 = vsel %vm403, %v543, 0
        %v587 = vsel %vm403, %v544, 0
        %v590 = vsel %vm403, %v545, 0
        %v593 = vsel %vm403, %v546, 0
        %v596 = vsel %vm403, %v547, 0
        %v599 = vsel %vm403, %v548, 0
        %601 = vmatprep.subr.bf16.mxu0 0
        %602 = vmatpush1.bf16.msra.mxu0 0
        %603 = vmatprep.subr.bf16.mxu0 0
        %604 = vmatpush1.bf16.msra.mxu0 0
        %605 = vmatprep.subr.bf16.mxu0 0
        %606 = vmatpush1.bf16.msra.mxu0 0
        %607 = vmatprep.subr.bf16.mxu0 0
        %608 = vmatpush1.bf16.msra.mxu0 0
        %609 = vmatprep.subr.bf16.mxu0 0
        %610 = vmatpush1.bf16.msra.mxu0 %v572
        %611 = vmatprep.subr.bf16.mxu0 0
        %612 = vmatpush1.bf16.msra.mxu0 %v571
        %613 = vmatprep.subr.bf16.mxu0 0
        %614 = vmatpush1.bf16.msra.mxu0 %v570
        %615 = vmatprep.subr.bf16.mxu0 0
        %616 = vmatpush1.bf16.msra.mxu0 %v569
        %617 = vmatprep.subr.bf16.mxu0 0
        %618 = vmatpush2.bf16.msra.mxu0 0
        %619 = vmatprep.subr.bf16.mxu0 0
        %620 = vmatpush2.bf16.msra.mxu0 0
        %621 = vmatprep.subr.bf16.mxu0 0
        %622 = vmatpush2.bf16.msra.mxu0 0
        %623 = vmatprep.subr.bf16.mxu0 0
        %624 = vmatpush2.bf16.msra.mxu0 0
        %625 = vmatprep.subr.bf16.mxu0 0
        %626 = vmatpush2.bf16.msra.mxu0 0
        %627 = vmatprep.subr.bf16.mxu0 0
        %628 = vmatpush2.bf16.msra.mxu0 0
        %629 = vmatprep.subr.bf16.mxu0 0
        %630 = vmatpush2.bf16.msra.mxu0 0
        %631 = vmatprep.subr.bf16.mxu0 0
        %632 = vmatpush2.bf16.msra.mxu0 0
        %633 = vmatprep.mubr.bf16.mxu0 0
        %634 = vmatmul.mubr.bf16.gmra.mxu0 %v578
        %v635 = vpop.f32.mrf.mxu0
        %v636 = vadd.f32 %v552, %v635
        %v637 = vpop.f32.mrf.mxu0
        %v638 = vpop.f32.mrf.mxu0
        %v639 = vadd.f32 %v552, %v638
        %v640 = vpop.f32.mrf.mxu0
        %641 = vmatprep.mubr.bf16.mxu0 0
        %642 = vmatmul.mubr.bf16.gmra.mxu0 %v581
        %v643 = vpop.f32.mrf.mxu0
        %v644 = vadd.f32 %v552, %v643
        %v645 = vpop.f32.mrf.mxu0
        %v646 = vpop.f32.mrf.mxu0
        %v647 = vadd.f32 %v552, %v646
        %v648 = vpop.f32.mrf.mxu0
        %649 = vmatprep.mubr.bf16.mxu0 0
        %650 = vmatmul.mubr.bf16.gmra.mxu0 %v584
        %v651 = vpop.f32.mrf.mxu0
        %v652 = vadd.f32 %v552, %v651
        %v653 = vpop.f32.mrf.mxu0
        %v654 = vpop.f32.mrf.mxu0
        %v655 = vadd.f32 %v552, %v654
        %v656 = vpop.f32.mrf.mxu0
        %657 = vmatprep.mubr.bf16.mxu0 0
        %658 = vmatmul.mubr.bf16.gmra.mxu0 %v587
        %v659 = vpop.f32.mrf.mxu0
        %v660 = vadd.f32 %v552, %v659
        %v661 = vpop.f32.mrf.mxu0
        %v662 = vpop.f32.mrf.mxu0
        %v663 = vadd.f32 %v552, %v662
        %v664 = vpop.f32.mrf.mxu0
        %665 = vmatprep.mubr.bf16.mxu0 0
        %666 = vmatmul.mubr.bf16.gmra.mxu0 %v590
        %v667 = vpop.f32.mrf.mxu0
        %v668 = vadd.f32 %v552, %v667
        %v669 = vpop.f32.mrf.mxu0
        %v670 = vpop.f32.mrf.mxu0
        %v671 = vadd.f32 %v552, %v670
        %v672 = vpop.f32.mrf.mxu0
        %673 = vmatprep.mubr.bf16.mxu0 0
        %674 = vmatmul.mubr.bf16.gmra.mxu0 %v593
        %v675 = vpop.f32.mrf.mxu0
        %v676 = vadd.f32 %v552, %v675
        %v677 = vpop.f32.mrf.mxu0
        %v678 = vpop.f32.mrf.mxu0
        %v679 = vadd.f32 %v552, %v678
        %v680 = vpop.f32.mrf.mxu0
        %681 = vmatprep.mubr.bf16.mxu0 0
        %682 = vmatmul.mubr.bf16.gmra.mxu0 %v596
        %v683 = vpop.f32.mrf.mxu0
        %v684 = vadd.f32 %v552, %v683
        %v685 = vpop.f32.mrf.mxu0
        %v686 = vpop.f32.mrf.mxu0
        %v687 = vadd.f32 %v552, %v686
        %v688 = vpop.f32.mrf.mxu0
        %689 = vmatprep.mubr.bf16.mxu0 0
        %690 = vmatmul.mubr.bf16.gmra.mxu0 %v599
        %v691 = vpop.f32.mrf.mxu0
        %v692 = vadd.f32 %v552, %v691
        %v693 = vpop.f32.mrf.mxu0
        %v694 = vpop.f32.mrf.mxu0
        %v695 = vadd.f32 %v552, %v694
        %v696 = vpop.f32.mrf.mxu0
        %697 = vdwg.mxu0
        %v698 = vtanh.pop %v636
        %v699 = vtanh.pop %v639
        %v700 = vtanh.pop %v644
        %v701 = vtanh.pop %v647
        %v702 = vtanh.pop %v652
        %v703 = vtanh.pop %v655
        %v704 = vtanh.pop %v660
        %v705 = vtanh.pop %v663
        %v706 = vtanh.pop %v668
        %v707 = vtanh.pop %v671
        %v708 = vtanh.pop %v676
        %v709 = vtanh.pop %v679
        %v710 = vtanh.pop %v684
        %v711 = vtanh.pop %v687
        %v712 = vtanh.pop %v692
        %v713 = vtanh.pop %v695
        %v714 = vpack.c.bf16 %v699, %v698
        %v715 = vpack.c.bf16 %v701, %v700
        %v716 = vpack.c.bf16 %v703, %v702
        %v717 = vpack.c.bf16 %v705, %v704
        %v718 = vpack.c.bf16 %v707, %v706
        %v719 = vpack.c.bf16 %v709, %v708
        %v720 = vpack.c.bf16 %v711, %v710
        %v721 = vpack.c.bf16 %v713, %v712
        %723 = vset.pattern.permute.xlu0 0
        %724 = vperm.xlu0 %723, %v194
        %v725 = vpop.permute.xlu0 %724
        %v728 = vsel %vm403, %v193, 0
        %v731 = vsel %vm403, %v714, 0
        %v734 = vsel %vm403, %v715, 0
        %v737 = vsel %vm403, %v716, 0
        %v740 = vsel %vm403, %v717, 0
        %v743 = vsel %vm403, %v718, 0
        %v746 = vsel %vm403, %v719, 0
        %v749 = vsel %vm403, %v720, 0
        %v752 = vsel %vm403, %v721, 0
        %754 = vmatprep.subr.bf16.mxu0 0
        %755 = vmatpush1.bf16.xpose.msra.mxu0 %v752
        %756 = vmatprep.subr.bf16.mxu0 0
        %757 = vmatpush1.bf16.xpose.msra.mxu0 %v749
        %758 = vmatprep.subr.bf16.mxu0 0
        %759 = vmatpush1.bf16.xpose.msra.mxu0 %v746
        %760 = vmatprep.subr.bf16.mxu0 0
        %761 = vmatpush1.bf16.xpose.msra.mxu0 %v743
        %762 = vmatprep.subr.bf16.mxu0 0
        %763 = vmatpush1.bf16.xpose.msra.mxu0 %v740
        %764 = vmatprep.subr.bf16.mxu0 0
        %765 = vmatpush1.bf16.xpose.msra.mxu0 %v737
        %766 = vmatprep.subr.bf16.mxu0 0
        %767 = vmatpush1.bf16.xpose.msra.mxu0 %v734
        %768 = vmatprep.subr.bf16.mxu0 0
        %769 = vmatpush1.bf16.xpose.msra.mxu0 %v731
        %770 = vmatprep.subr.bf16.mxu0 0
        %771 = vmatpush2.bf16.xpose.msra.mxu0 0
        %772 = vmatprep.subr.bf16.mxu0 0
        %773 = vmatpush2.bf16.xpose.msra.mxu0 0
        %774 = vmatprep.subr.bf16.mxu0 0
        %775 = vmatpush2.bf16.xpose.msra.mxu0 0
        %776 = vmatprep.subr.bf16.mxu0 0
        %777 = vmatpush2.bf16.xpose.msra.mxu0 0
        %778 = vmatprep.subr.bf16.mxu0 0
        %779 = vmatpush2.bf16.xpose.msra.mxu0 0
        %780 = vmatprep.subr.bf16.mxu0 0
        %781 = vmatpush2.bf16.xpose.msra.mxu0 0
        %782 = vmatprep.subr.bf16.mxu0 0
        %783 = vmatpush2.bf16.xpose.msra.mxu0 0
        %784 = vmatprep.subr.bf16.mxu0 0
        %785 = vmatpush2.bf16.xpose.msra.mxu0 0
        %786 = vmatprep.mubr.bf16.mxu0 0
        %787 = vmatmul.mubr.bf16.gmra.mxu0 %v728
        %v788 = vpop.f32.mrf.mxu0
        %v789 = vadd.f32 %v725, %v788
        %v790 = vpop.f32.mrf.mxu0
        %v791 = vpop.f32.mrf.mxu0
        %v792 = vpop.f32.mrf.mxu0
        %793 = vdwg.mxu0
        %794 = vst [vmem:[%s163] sm:$0x1] %v789
        %s795 = sand.u32 %s93, 1
        %s796 = scalar_lea.sflag [#allocation3], %s795
        %s797 = sand.u32 %s93, 1
        %s798 = scalar_lea.vmem [#allocation2], %s797
        // Predicated region
        $region33: #{tpu_custom_call.1} parent=31 // pred_check
          %p799 = pneg %p103
        $region34: #{tpu_custom_call.1} parent=31 // pred_check_branch
          %801 = sbr.rel (%p799) target = $region36
        $region35: #{tpu_custom_call.1} parent=31 // pred_region
          %s803 = ssub.s32 16, 16
          %804 = vsyncadd %s796, %s803
          %s805 = smul.addr %s17, 16
          %s806 = scalar_lea.hbm %s3, %s805
          %s808 = sshll.u32 %s798, 4
          %s809 = int_to_ptr.vmem [resolvable:$true] %s808
          %811 = dma.vmem_to_hbm [thread:$0]  %s809, 16, %s806, %s796
        $region36: #{tpu_custom_call.1} parent=31 // pred_fallthru
          _
      $region32: #{tpu_custom_call.1} parent=5 // pred_fallthru
        _
      %p812 = scmp.le.s32.totalorder 2, %s12
      // Predicated region
      $region37: #{tpu_custom_call.1} parent=5 // pred_check
        %p813 = pneg %p812
      $region38: #{tpu_custom_call.1} parent=5 // pred_check_branch
        %815 = sbr.rel (%p813) target = $region40
      $region39: #{tpu_custom_call.1} parent=5 // pred_region
        %s816 = ssub.s32 %s12, 2
        // Predicated region
        $region41: #{tpu_custom_call.1} parent=39 // pred_check
          %p817 = pneg %p109
        $region42: #{tpu_custom_call.1} parent=39 // pred_check_branch
          %819 = sbr.rel (%p817) target = $region44
        $region43: #{tpu_custom_call.1} parent=39 // pred_region
          %s820 = sand.u32 %s94, 1
          %s821 = scalar_lea.sflag [#allocation3], %s820
          %s822 = sand.u32 %s94, 1
          %s823 = scalar_lea.vmem [#allocation2], %s822
          %824 = dma.done %s821, 16
        $region44: #{tpu_custom_call.1} parent=39 // pred_fallthru
          _
      $region40: #{tpu_custom_call.1} parent=5 // pred_fallthru
        _
    $region6: #{tpu_custom_call.1} parent=1 // loop_footer
      %s16 = sadd.s32 1, %s12
    $region7: #{tpu_custom_call.1} parent=1 // loop_footer_branch
      %11 = sbr.rel target = $region3
    $region8: #{tpu_custom_call.1} parent=1 // loop_exit
      _
    %825 = vsyncpa [#allocation3], 1
    %s826 = scalar_lea.sflag [#allocation3], 1
    %827 = vsyncpa %s826, 1

</llo_original>
